<compile_context>
chip_gen: v5e
topology: v5e:2x2
jax: 0.10.0
libtpu: 0.0.40
codegen_flags: <defaults>
</compile_context>

<pallas_src>
import functools

import jax
import jax.numpy as jnp
from jax.experimental import pallas as pl
from jax.experimental.pallas import tpu as pltpu


def _round_up(a, b):
    return (a + b - 1) // b * b


def _vmem_budget_and_limit():
    """Generation-aware VMEM budget + vmem_limit_bytes for CompilerParams."""
    cap = 64 * 1024 * 1024                      # safe default (v7x per-core VMEM)
    try:
        cap = int(pltpu.get_tpu_info().vmem_capacity_bytes)
    except Exception:                           # query unavailable -> stay safe
        pass
    cap = max(32 * 1024 * 1024, min(cap, 256 * 1024 * 1024))
    budget = int(cap * 0.68)                    # ~87 MiB v5e/v6e, ~44 MiB v7x
    limit = max(budget, min(int(cap * 0.85), cap - 4 * 1024 * 1024))
    return budget, limit


def _pick_tiles(n_rows, h_pad, dsize, use_layernorm, budget):
    """Pick (tm, tn).  tn == h_pad selects the full-weight-resident fast path."""

    def est(tm_, tn_):
        full = tn_ == h_pad
        e = 2 * h_pad * tn_ * dsize             # weight slab (double-buffered)
        e += 2 * tm_ * h_pad * dsize            # resident full-width x block
        if not full:
            e += 2 * tm_ * tn_ * dsize          # residual column tile
        e += 2 * tm_ * tn_ * dsize              # output tile
        e += tm_ * tn_ * 4                      # f32 matmul result (internal)
        e += 6 * h_pad * dsize                  # bias / gamma / beta rows
        if use_layernorm:
            e += tm_ * h_pad * dsize            # normalized-x scratch
        return e

    # tm is the arithmetic-intensity knob (~tm flops per streamed weight byte):
    # target 768 (v6e/v7x compute-bound threshold ~600-650); only drop below
    # 256 (v5e threshold ~240) if VMEM forces it.
    tm = min(768, max(8, _round_up(n_rows, 8)))
    if use_layernorm and n_rows >= 16:
        # keep ni >= 2 so a megacore split of the (only parallel) row axis
        # has work for both TensorCores.
        tm = min(tm, max(8, _round_up((n_rows + 1) // 2, 8)))

    # Full-weight-resident fast path: weight is DMA'd exactly once overall.
    for tm_try in sorted({tm, min(tm, 512), min(tm, 256)}, reverse=True):
        if est(tm_try, h_pad) <= budget:
            return tm_try, h_pad

    # Streaming path: weight re-read once per row tile.  Shrink tn first,
    # tm last (shrinking tm lowers the flops/byte of weight streaming).
    tn = 256 if h_pad % 256 == 0 else 128
    while est(tm, tn) > budget and tn > 128:
        tn //= 2
    while est(tm, tn) > budget and tm > 8:
        tm = max(8, _round_up(tm // 2, 8))
    return tm, tn


def _ff_kernel(*refs, use_layernorm, separate_residual, eps, valid_h):
    """refs = (x_full, [x_res], w_t, b, [gamma, beta], out, [xn_scratch]).

    out[:, j] = relu((LN(x) if use_layernorm else x) @ w_t[:, j] + b_j) + x[:, j]
    """
    it = iter(refs)
    x_ref = next(it)
    xres_ref = next(it) if separate_residual else x_ref
    w_ref = next(it)
    b_ref = next(it)
    if use_layernorm:
        g_ref = next(it)
        beta_ref = next(it)
    o_ref = next(it)

    if use_layernorm:
        xn_ref = next(it)

        # LayerNorm in f32 over the real (unpadded) hidden width, computed only
        # once per row tile (j == 0) and reused from VMEM scratch for every
        # output-column tile; padded lanes are masked out of the statistics.
        @pl.when(pl.program_id(1) == 0)
        def _():
            xf = x_ref[...].astype(jnp.float32)
            hp = xf.shape[-1]
            inv_h = 1.0 / valid_h
            if valid_h != hp:                    # static branch
                mask = jax.lax.broadcasted_iota(jnp.int32, xf.shape, 1) < valid_h
                xf = jnp.where(mask, xf, 0.0)
            mean = jnp.sum(xf, axis=-1, keepdims=True) * inv_h
            cent = xf - mean
            if valid_h != hp:
                cent = jnp.where(mask, cent, 0.0)
            var = jnp.sum(cent * cent, axis=-1, keepdims=True) * inv_h
            xn = cent * jax.lax.rsqrt(var + eps)
            xn = (xn * g_ref[...].astype(jnp.float32)
                  + beta_ref[...].astype(jnp.float32))
            xn_ref[...] = xn.astype(xn_ref.dtype)   # single full-width store

        lhs = xn_ref[...]
    else:
        lhs = x_ref[...]

    # Native-dtype operands straight to the MXU with f32 accumulation.  The
    # weight was pre-transposed in the wrapper -> plain NN contraction; the
    # whole K reduction stays inside this single matmul.
    acc = jnp.dot(lhs, w_ref[...], preferred_element_type=jnp.float32)
    h = jnp.maximum(acc + b_ref[...].astype(jnp.float32), 0.0)
    o_ref[...] = (h + xres_ref[...].astype(jnp.float32)).astype(o_ref.dtype)


def residual_ff_layers(x, weight, bias, gamma=None, beta=None, *,
                       use_layernorm=False, eps=1e-5, _tile_override=None):
    """Pallas forward of ResidualFFlayers (dropout = eval-mode identity).

    x:      (N, H)
    weight: (H, H)  -- PyTorch nn.Linear layout (out_features, in_features)
    bias:   (H,)
    gamma/beta: (H,) LayerNorm affine params (only used if use_layernorm)
    """
    N, H = x.shape
    assert weight.shape == (H, H) and bias.shape == (H,)
    dt = x.dtype
    dsize = jnp.dtype(dt).itemsize
    Hp = _round_up(H, 128)

    budget, vmem_limit = _vmem_budget_and_limit()
    if _tile_override is not None:
        tm, tn = _tile_override
    else:
        tm, tn = _pick_tiles(N, Hp, dsize, use_layernorm, budget)
    Np = _round_up(N, tm)
    ni, nj = Np // tm, Hp // tn
    separate_residual = tn != Hp

    # Zero-pad to lane/sublane-aligned shapes (no-op when already aligned).
    x_p = x if (Np, Hp) == (N, H) else jnp.pad(x, ((0, Np - N), (0, Hp - H)))
    # Pre-transpose the PyTorch (out, in) weight once, wrapper side, so the
    # kernel never transposes a weight tile per step.
    w_t = jnp.transpose(weight)
    if Hp != H:
        w_t = jnp.pad(w_t, ((0, Hp - H), (0, Hp - H)))
    b_p = (bias if Hp == H else jnp.pad(bias, (0, Hp - H))).reshape(1, Hp)

    xfull_spec = pl.BlockSpec((tm, Hp), lambda i, j: (i, 0))   # resident per i
    xres_spec = pl.BlockSpec((tm, tn), lambda i, j: (i, j))
    w_spec = pl.BlockSpec((Hp, tn), lambda i, j: (0, j))       # once per i
    b_spec = pl.BlockSpec((1, tn), lambda i, j: (0, j))
    row_spec = pl.BlockSpec((1, Hp), lambda i, j: (0, 0))
    out_spec = pl.BlockSpec((tm, tn), lambda i, j: (i, j))

    in_specs = [xfull_spec]
    operands = [x_p]
    if separate_residual:
        in_specs.append(xres_spec)
        operands.append(x_p)
    in_specs += [w_spec, b_spec]
    operands += [w_t, b_p]
    scratch = []
    if use_layernorm:
        assert gamma is not None and beta is not None
        g_p = (gamma if Hp == H else jnp.pad(gamma, (0, Hp - H))).reshape(1, Hp)
        be_p = (beta if Hp == H else jnp.pad(beta, (0, Hp - H))).reshape(1, Hp)
        in_specs += [row_spec, row_spec]
        operands += [g_p, be_p]
        scratch.append(pltpu.VMEM((tm, Hp), dt))
        # LayerNorm is only computed at j == 0; a megacore split of axis 1
        # would skip it on the second core, so axis 1 must stay "arbitrary".
        dims = ("parallel", "arbitrary")
    else:
        dims = ("parallel", "parallel")

    kernel = functools.partial(
        _ff_kernel, use_layernorm=use_layernorm,
        separate_residual=separate_residual, eps=eps, valid_h=H)

    out = pl.pallas_call(
        kernel,
        out_shape=jax.ShapeDtypeStruct((Np, Hp), dt),
        grid_spec=pltpu.PrefetchScalarGridSpec(
            num_scalar_prefetch=0,
            grid=(ni, nj),
            in_specs=in_specs,
            out_specs=out_spec,
            scratch_shapes=tuple(scratch)),
        compiler_params=pltpu.CompilerParams(
            dimension_semantics=dims,
            vmem_limit_bytes=vmem_limit),
    )(*operands)

    if (Np, Hp) != (N, H):
        out = out[:N, :H]
    return out


def _reference(x, weight, bias, gamma, beta, use_layernorm, eps=1e-5):
    xf = x.astype(jnp.float32)
    if use_layernorm:
        mean = jnp.mean(xf, axis=-1, keepdims=True)
        var = jnp.mean((xf - mean) ** 2, axis=-1, keepdims=True)
        out = (xf - mean) / jnp.sqrt(var + eps) * gamma + beta
    else:
        out = xf
    h = jnp.maximum(
        jnp.dot(out, weight.T.astype(jnp.float32),
                precision=jax.lax.Precision.HIGHEST) + bias, 0.0)
    return (h + xf).astype(x.dtype)


def _make_params(key, hidden_dim, dtype=jnp.float32):
    k_x, k_w, k_b, k_g, k_be = jax.random.split(key, 5)
    bound = 1.0 / float(hidden_dim) ** 0.5
    weight = jax.random.uniform(k_w, (hidden_dim, hidden_dim),
                                minval=-bound, maxval=bound, dtype=dtype)
    bias = jax.random.uniform(k_b, (hidden_dim,),
                              minval=-bound, maxval=bound, dtype=dtype)
    gamma = (jnp.ones((hidden_dim,), dtype)
             + 0.01 * jax.random.normal(k_g, (hidden_dim,), dtype))
    beta = 0.01 * jax.random.normal(k_be, (hidden_dim,), dtype)
    return k_x, weight, bias, gamma, beta


def _check(name, out, ref, atol=2e-2, rtol=2e-2):
    if not jnp.allclose(out, ref, atol=atol, rtol=rtol):
        err = float(jnp.max(jnp.abs(out.astype(jnp.float32)
                                    - ref.astype(jnp.float32))))
        raise SystemExit(f"MISMATCH ({name}): max_abs_err={err}")


if __name__ == "__main__":
    key = jax.random.PRNGKey(0)
    k1, k2 = jax.random.split(key)

    dropout = 0.1  # nn.Dropout -> eval-mode identity in this inference kernel

    # Case 1: module-sized shapes (batch=8, hidden=32); auto-picked tiles take
    # the full-weight-resident fast path (tn == Hp, single output-column tile).
    batch, hidden_dim = 8, 32
    kx, weight, bias, gamma, beta = _make_params(k1, hidden_dim)
    x = jax.random.normal(kx, (batch, hidden_dim), dtype=jnp.float32)
    for use_ln in (False, True):
        out = jax.block_until_ready(
            residual_ff_layers(x, weight, bias, gamma, beta,
                               use_layernorm=use_ln))
        _check(f"resident use_ln={use_ln}",
               out, _reference(x, weight, bias, gamma, beta, use_ln))

    # Case 2: force the multi-tile streaming path (tn < Hp, ni > 1, nj > 1) so
    # the j==0-gated LayerNorm reuse, per-tile residual and padding are also
    # exercised.
    batch2, hidden2 = 16, 192
    kx2, weight2, bias2, gamma2, beta2 = _make_params(k2, hidden2)
    x2 = jax.random.normal(kx2, (batch2, hidden2), dtype=jnp.float32)
    for use_ln in (False, True):
        out = jax.block_until_ready(
            residual_ff_layers(x2, weight2, bias2, gamma2, beta2,
                               use_layernorm=use_ln,
                               _tile_override=(8, 128)))
        _check(f"streaming use_ln={use_ln}",
               out, _reference(x2, weight2, bias2, gamma2, beta2, use_ln))

    print("KERNEL_OK")
</pallas_src>

<mosaic_0001>
module attributes {stable_mosaic.version = 11 : i64} {
  func.func @_ff_kernel(%arg0: i32, %arg1: i32, %arg2: memref<8x128xf32, #tpu.memory_space<vmem>>, %arg3: memref<128x128xf32, #tpu.memory_space<vmem>>, %arg4: memref<1x128xf32, #tpu.memory_space<vmem>>, %arg5: memref<8x128xf32, #tpu.memory_space<vmem>>) attributes {dimension_semantics = [#tpu.dimension_semantics<parallel>, #tpu.dimension_semantics<parallel>], iteration_bounds = array<i64: 1, 1>, scalar_prefetch = 0 : i64, scratch_operands = 0 : i64, tpu.core_type = #tpu.core_type<tc>, window_params = [{transform_indices = @transform_0, window_bounds = array<i64: 8, 128>}, {transform_indices = @transform_1, window_bounds = array<i64: 128, 128>}, {transform_indices = @transform_2, window_bounds = array<i64: 1, 128>}, {transform_indices = @transform_3, window_bounds = array<i64: 8, 128>}]} {
    %c0 = arith.constant 0 : index
    %c0_0 = arith.constant 0 : index
    %0 = vector.load %arg2[%c0, %c0_0] : memref<8x128xf32, #tpu.memory_space<vmem>>, vector<8x128xf32>
    %c0_1 = arith.constant 0 : index
    %c0_2 = arith.constant 0 : index
    %1 = vector.load %arg3[%c0_1, %c0_2] : memref<128x128xf32, #tpu.memory_space<vmem>>, vector<128x128xf32>
    %cst = arith.constant dense<0.000000e+00> : vector<8x128xf32>
    %2 = tpu.matmul %0, %1, %cst {dimension_numbers = #tpu.dot_dimension_numbers<[1], [0], [0], [1], [0, 0, 1, 1], [], []>} : vector<8x128xf32>, vector<128x128xf32>, vector<8x128xf32> -> vector<8x128xf32>
    %c0_3 = arith.constant 0 : index
    %c0_4 = arith.constant 0 : index
    %3 = vector.load %arg4[%c0_3, %c0_4] : memref<1x128xf32, #tpu.memory_space<vmem>>, vector<1x128xf32>
    %4 = vector.broadcast %3 : vector<1x128xf32> to vector<8x128xf32>
    %5 = arith.addf %2, %4 : vector<8x128xf32>
    %cst_5 = arith.constant 0.000000e+00 : f32
    %6 = vector.broadcast %cst_5 : f32 to vector<8x128xf32>
    %7 = arith.maximumf %5, %6 : vector<8x128xf32>
    %c0_6 = arith.constant 0 : index
    %c0_7 = arith.constant 0 : index
    %8 = vector.load %arg2[%c0_6, %c0_7] : memref<8x128xf32, #tpu.memory_space<vmem>>, vector<8x128xf32>
    %9 = arith.addf %7, %8 : vector<8x128xf32>
    %c0_8 = arith.constant 0 : index
    %c0_9 = arith.constant 0 : index
    %10 = vector.load %arg5[%c0_8, %c0_9] : memref<8x128xf32, #tpu.memory_space<vmem>>, vector<8x128xf32>
    tpu.vector_store %arg5[%c0_8, %c0_9], %9 {strides = array<i32>} : memref<8x128xf32, #tpu.memory_space<vmem>>, vector<8x128xf32>,
    return
  }
  func.func @transform_0(%arg0: i32, %arg1: i32) -> (i32, i32) {
    %c0_i32 = arith.constant 0 : i32
    %c0_i32_0 = arith.constant 0 : i32
    return %arg0, %c0_i32 : i32, i32
  }
  func.func @transform_1(%arg0: i32, %arg1: i32) -> (i32, i32) {
    %c0_i32 = arith.constant 0 : i32
    %c0_i32_0 = arith.constant 0 : i32
    return %c0_i32, %arg1 : i32, i32
  }
  func.func @transform_2(%arg0: i32, %arg1: i32) -> (i32, i32) {
    %c0_i32 = arith.constant 0 : i32
    %c0_i32_0 = arith.constant 0 : i32
    return %c0_i32, %arg1 : i32, i32
  }
  func.func @transform_3(%arg0: i32, %arg1: i32) -> (i32, i32) {
    %c0_i32 = arith.constant 0 : i32
    return %arg0, %arg1 : i32, i32
  }
}

</mosaic_0001>

<llo_original>
// kernel: tpu_custom_call.1
$region0: #{tpu_custom_call.1}
  #allocation0 [shape = 'u32[]', space=smem, size = 0x4, offset = 0x4, fixed_abs, tag = 'smem constant byte address 0x4 - core index']
  #allocation1 [shape = 'u32[72,128]{1,0:T(1,128)}', space=vmem, size = 0x9000, scoped, tag = 'internal scratch']
  %s0 = inlined_call_operand.hbm [shape: f32[8,128], index: 0, kind: input, shape index: {}]
  %s1 = inlined_call_operand.hbm [shape: f32[128,128], index: 1, kind: input, shape index: {}]
  %s2 = inlined_call_operand.vmem [shape: f32[1,128], index: 2, kind: input, shape index: {}]
  %s3 = inlined_call_operand.hbm [shape: f32[8,128], index: 3, kind: output, shape index: {}]
  %s4 = sld [smem:[#allocation0]]
  $region30: #{tpu_custom_call.1} parent=0
    _
  %s6 = ssub.s32 1, %s4
  %s7 = scalar_select 0, %s6, %s4
  $region1: #{tpu_custom_call.1} parent=0
    #allocation2 [shape = 'u8[4096]{0}', space=vmem, size = 0x1000, scoped, tag = 'input window, operand 0, single buffered']
    #allocation3 [shape = 's32[1]{0}', space=sflag, size = 0x4, scoped, tag = 'scoped memory for tpu_custom_call.1']
    #allocation4 [shape = 's32[1]{0}', space=sflag, size = 0x4, scoped, tag = 'scoped memory for tpu_custom_call.1']
    #allocation5 [shape = 'u8[65536]{0}', space=vmem, size = 0x10000, scoped, tag = 'input window, operand 1, single buffered']
    #allocation6 [shape = 's32[1]{0}', space=sflag, size = 0x4, scoped, tag = 'scoped memory for tpu_custom_call.1']
    #allocation7 [shape = 'u8[4096]{0}', space=vmem, size = 0x1000, scoped, tag = 'output window, operand 0, single buffered']
    %8 = vsyncpa [#allocation3], 0
    %9 = vsyncpa [#allocation6], 0
    %10 = vsyncpa [#allocation4], 0
    // Predicated region
    $region2: #{tpu_custom_call.1} parent=1 // pred_check
      _
    $region3: #{tpu_custom_call.1} parent=1 // pred_check_branch
      %12 = sbr.rel (0) target = $region5
    $region4: #{tpu_custom_call.1} parent=1 // pred_region
      %14 = vsyncadd [#allocation3], 0
      %s16 = sshll.u32 %s0, 4
      %s17 = int_to_ptr.hbm [resolvable:$true] %s16
      %s18 = sshll.u32 [#allocation2], 4
      %s19 = int_to_ptr.vmem [resolvable:$true] %s18
      %21 = dma.hbm_to_vmem [thread:$0]  %s17, 128, %s19, [#allocation3]
    $region5: #{tpu_custom_call.1} parent=1 // pred_fallthru
      _
    // Predicated region
    $region6: #{tpu_custom_call.1} parent=1 // pred_check
      _
    $region7: #{tpu_custom_call.1} parent=1 // pred_check_branch
      %23 = sbr.rel (0) target = $region9
    $region8: #{tpu_custom_call.1} parent=1 // pred_region
      %25 = vsyncadd [#allocation6], 0
      %s26 = sshll.u32 %s1, 4
      %s27 = int_to_ptr.hbm [resolvable:$true] %s26
      %s28 = sshll.u32 [#allocation5], 4
      %s29 = int_to_ptr.vmem [resolvable:$true] %s28
      %34 = dma.hbm_to_vmem [thread:$0]  %s27, 2048, %s29, [#allocation6], 128, 128, 8
    $region9: #{tpu_custom_call.1} parent=1 // pred_fallthru
      _
    // Predicated region
    $region10: #{tpu_custom_call.1} parent=1 // pred_check
      _
    $region11: #{tpu_custom_call.1} parent=1 // pred_check_branch
      %36 = sbr.rel (0) target = $region13
    $region12: #{tpu_custom_call.1} parent=1 // pred_region
      _
    $region13: #{tpu_custom_call.1} parent=1 // pred_fallthru
      _
    // Predicated region
    $region14: #{tpu_custom_call.1} parent=1 // pred_check
      _
    $region15: #{tpu_custom_call.1} parent=1 // pred_check_branch
      %38 = sbr.rel (0) target = $region17
    $region16: #{tpu_custom_call.1} parent=1 // pred_region
      %40 = dma.done [#allocation3], 128
    $region17: #{tpu_custom_call.1} parent=1 // pred_fallthru
      _
    // Predicated region
    $region18: #{tpu_custom_call.1} parent=1 // pred_check
      _
    $region19: #{tpu_custom_call.1} parent=1 // pred_check_branch
      %42 = sbr.rel (0) target = $region21
    $region20: #{tpu_custom_call.1} parent=1 // pred_region
      %44 = dma.done [#allocation6], 2048
    $region21: #{tpu_custom_call.1} parent=1 // pred_fallthru
      _
    %v45 = vld [vmem:[#allocation2] sm:$0xff]
    %v46 = vld [vmem:[#allocation5] sm:$0xff]
    %v47 = vld [vmem:[#allocation5 + $0x8] sm:$0xff]
    %v48 = vld [vmem:[#allocation5 + $0x10] sm:$0xff]
    %v49 = vld [vmem:[#allocation5 + $0x18] sm:$0xff]
    %v50 = vld [vmem:[#allocation5 + $0x20] sm:$0xff]
    %v51 = vld [vmem:[#allocation5 + $0x28] sm:$0xff]
    %v52 = vld [vmem:[#allocation5 + $0x30] sm:$0xff]
    %v53 = vld [vmem:[#allocation5 + $0x38] sm:$0xff]
    %v54 = vld [vmem:[#allocation5 + $0x40] sm:$0xff]
    %v55 = vld [vmem:[#allocation5 + $0x48] sm:$0xff]
    %v56 = vld [vmem:[#allocation5 + $0x50] sm:$0xff]
    %v57 = vld [vmem:[#allocation5 + $0x58] sm:$0xff]
    %v58 = vld [vmem:[#allocation5 + $0x60] sm:$0xff]
    %v59 = vld [vmem:[#allocation5 + $0x68] sm:$0xff]
    %v60 = vld [vmem:[#allocation5 + $0x70] sm:$0xff]
    %v61 = vld [vmem:[#allocation5 + $0x78] sm:$0xff]
    %v62 = vld [vmem:[%s2] sm:$0x1]
    %v64 = vperm.slane %v62, 0
    %66 = vmatpush.msra.mxu0 %v61
    %67 = vmatpush.msra.mxu0 %v60
    %68 = vmatpush.msra.mxu0 %v59
    %69 = vmatpush.msra.mxu0 %v58
    %70 = vmatpush.msra.mxu0 %v57
    %71 = vmatpush.msra.mxu0 %v56
    %72 = vmatpush.msra.mxu0 %v55
    %73 = vmatpush.msra.mxu0 %v54
    %74 = vmatpush.msra.mxu0 %v53
    %75 = vmatpush.msra.mxu0 %v52
    %76 = vmatpush.msra.mxu0 %v51
    %77 = vmatpush.msra.mxu0 %v50
    %78 = vmatpush.msra.mxu0 %v49
    %79 = vmatpush.msra.mxu0 %v48
    %80 = vmatpush.msra.mxu0 %v47
    %81 = vmatpush.msra.mxu0 %v46
    %82 = vmatmul.f32.gmra.mxu0 %v45
    %v83 = vpop.f32.mrf.mxu0
    %v84 = vadd.f32 %v64, %v83
    %85 = vdwg.mxu0
    %v86 = vmax.f32 %v84, 0.0
    %v87 = vadd.f32 %v86, %v45
    %88 = vst [vmem:[#allocation7] sm:$0xff] %v87
    // Predicated region
    $region22: #{tpu_custom_call.1} parent=1 // pred_check
      _
    $region23: #{tpu_custom_call.1} parent=1 // pred_check_branch
      %90 = sbr.rel (0) target = $region25
    $region24: #{tpu_custom_call.1} parent=1 // pred_region
      %92 = vsyncadd [#allocation4], 0
      %s94 = sshll.u32 [#allocation7], 4
      %s95 = int_to_ptr.vmem [resolvable:$true] %s94
      %s96 = sshll.u32 %s3, 4
      %s97 = int_to_ptr.hbm [resolvable:$true] %s96
      %99 = dma.vmem_to_hbm [thread:$0]  %s95, 128, %s97, [#allocation4]
    $region25: #{tpu_custom_call.1} parent=1 // pred_fallthru
      _
    // Predicated region
    $region26: #{tpu_custom_call.1} parent=1 // pred_check
      _
    $region27: #{tpu_custom_call.1} parent=1 // pred_check_branch
      %101 = sbr.rel (0) target = $region29
    $region28: #{tpu_custom_call.1} parent=1 // pred_region
      %103 = dma.done [#allocation4], 128
    $region29: #{tpu_custom_call.1} parent=1 // pred_fallthru
      _
    %104 = vsyncpa [#allocation3], 1
    %105 = vsyncpa [#allocation6], 1
    %106 = vsyncpa [#allocation4], 1

</llo_original>
